<compile_context>
chip_gen: v7x
topology: tpu7x:2x2x1
jax: 0.10.0
libtpu: 0.0.40
codegen_flags: <defaults>
</compile_context>

<pallas_src>
import jax
import jax.numpy as jnp
from jax.experimental import pallas as pl
from jax.experimental.pallas import tpu as pltpu

H = 10        # true hidden width
HP = 16       # padded hidden width (sublane-friendly; row 10 carries the fc2 bias)


def mlp_kernel(x_ref, p_ref, o_ref):
    # x_ref : (1, Np)       batch on lanes
    # p_ref : (3, HP, Np)   [0]=w1, [1]=b1 (+1.0 in bias row), [2]=w2 (+b2 in bias row)
    # o_ref : (1, Np)
    x = x_ref[...]                                              # (1, Np)
    # fc1 + ReLU, pure VPU broadcast-multiply: (HP, Np)
    h = jnp.maximum(p_ref[0] * x + p_ref[1], 0.0)
    # fc2 (+ fc2 bias via the folded dummy unit): small sublane reduce -> (1, Np)
    o_ref[...] = jnp.sum(h * p_ref[2], axis=0, keepdims=True)


@jax.jit
def mlp_forward(x, w1, b1, w2, b2):
    """x: (N, 1); w1: (1, 10); b1: (1, 10); w2: (10, 1); b2: (1, 1) -> (N, 1)."""
    N = x.shape[0]
    Np = ((N + 127) // 128) * 128            # pad batch to a multiple of 128 lanes

    # Lane-dense input: batch along lanes, zero-padded tail (sliced off below).
    x_lanes = jnp.zeros((1, Np), jnp.float32).at[0, :N].set(x[:, 0].astype(jnp.float32))

    # Pack all parameters into a single VMEM-friendly (3, HP, Np) f32 tensor.
    w1_v = w1.reshape(H).astype(jnp.float32)     # (10,)  fc1 weight (in=1 -> out=10)
    b1_v = b1.reshape(H).astype(jnp.float32)     # (10,)  fc1 bias
    w2_v = w2.reshape(H).astype(jnp.float32)     # (10,)  fc2 weight (in=10 -> out=1)
    b2_s = b2.reshape(()).astype(jnp.float32)    # ()     fc2 bias

    w1_pad = jnp.zeros((HP,), jnp.float32).at[:H].set(w1_v)
    # Dummy unit H: relu(0*x + 1) == 1, weighted by b2 below -> adds exactly b2.
    b1_pad = jnp.zeros((HP,), jnp.float32).at[:H].set(b1_v).at[H].set(1.0)
    w2_pad = jnp.zeros((HP,), jnp.float32).at[:H].set(w2_v).at[H].set(b2_s)

    params = jnp.stack([w1_pad, b1_pad, w2_pad], axis=0)                 # (3, HP)
    params = jnp.broadcast_to(params[:, :, None], (3, HP, Np))           # lane-broadcast at trace time
    params = params.astype(jnp.float32)

    y_lanes = pl.pallas_call(
        mlp_kernel,
        out_shape=jax.ShapeDtypeStruct((1, Np), jnp.float32),
        in_specs=[
            pl.BlockSpec(memory_space=pltpu.VMEM),  # x      (1, Np)
            pl.BlockSpec(memory_space=pltpu.VMEM),  # params (3, HP, Np)
        ],
        out_specs=pl.BlockSpec(memory_space=pltpu.VMEM),
    )(x_lanes, params)

    # Back to the module's (N, 1) layout; drop the lane padding (fused in the same jit).
    return y_lanes[0, :N][:, None]


def init_params(key):
    # PyTorch nn.Linear default init: U(-1/sqrt(fan_in), 1/sqrt(fan_in))
    k1, k2, k3, k4 = jax.random.split(key, 4)
    bound1 = 1.0 / jnp.sqrt(1.0)   # fc1: fan_in = 1
    bound2 = 1.0 / jnp.sqrt(10.0)  # fc2: fan_in = 10
    w1 = jax.random.uniform(k1, (1, 10), jnp.float32, -bound1, bound1)   # (in, out)
    b1 = jax.random.uniform(k2, (1, 10), jnp.float32, -bound1, bound1)
    w2 = jax.random.uniform(k3, (10, 1), jnp.float32, -bound2, bound2)   # (in, out)
    b2 = jax.random.uniform(k4, (1, 1), jnp.float32, -bound2, bound2)
    return w1, b1, w2, b2


if __name__ == "__main__":
    key = jax.random.PRNGKey(0)
    w1, b1, w2, b2 = init_params(key)

    # matches the script's input: x = unsqueeze(linspace(-1, 1, 100), dim=1) -> (100, 1)
    x = jnp.linspace(-1.0, 1.0, 100, dtype=jnp.float32)[:, None]

    out = mlp_forward(x, w1, b1, w2, b2)
    jax.block_until_ready(out)

    # reference check in plain JAX (same semantics as the PyTorch module)
    ref = jnp.maximum(x @ w1 + b1, 0.0) @ w2 + b2
    assert out.shape == (100, 1)
    assert jnp.allclose(out, ref, atol=1e-5, rtol=1e-5)

    print("KERNEL_OK")
</pallas_src>

<mosaic_0001>
module attributes {stable_mosaic.version = 11 : i64} {
  func.func @mlp_kernel(%arg0: memref<1x128xf32, #tpu.memory_space<vmem>>, %arg1: memref<3x16x128xf32, #tpu.memory_space<vmem>>, %arg2: memref<1x128xf32, #tpu.memory_space<vmem>>) attributes {dimension_semantics = [], scalar_prefetch = 0 : i64, scratch_operands = 0 : i64, tpu.core_type = #tpu.core_type<tc>} {
    %c0 = arith.constant 0 : index
    %c0_0 = arith.constant 0 : index
    %0 = vector.load %arg0[%c0, %c0_0] : memref<1x128xf32, #tpu.memory_space<vmem>>, vector<1x128xf32>
    %c0_1 = arith.constant 0 : index
    %c0_2 = arith.constant 0 : index
    %c0_3 = arith.constant 0 : index
    %1 = vector.load %arg1[%c0_1, %c0_2, %c0_3] : memref<3x16x128xf32, #tpu.memory_space<vmem>>, vector<1x16x128xf32>
    %2 = vector.shape_cast %1 : vector<1x16x128xf32> to vector<16x128xf32>
    %3 = vector.broadcast %0 : vector<1x128xf32> to vector<16x128xf32>
    %4 = arith.mulf %2, %3 : vector<16x128xf32>
    %c1 = arith.constant 1 : index
    %c0_4 = arith.constant 0 : index
    %c0_5 = arith.constant 0 : index
    %5 = vector.load %arg1[%c1, %c0_4, %c0_5] : memref<3x16x128xf32, #tpu.memory_space<vmem>>, vector<1x16x128xf32>
    %6 = vector.shape_cast %5 : vector<1x16x128xf32> to vector<16x128xf32>
    %7 = arith.addf %4, %6 : vector<16x128xf32>
    %cst = arith.constant 0.000000e+00 : f32
    %8 = vector.broadcast %cst : f32 to vector<16x128xf32>
    %9 = arith.maximumf %7, %8 : vector<16x128xf32>
    %c2 = arith.constant 2 : index
    %c0_6 = arith.constant 0 : index
    %c0_7 = arith.constant 0 : index
    %10 = vector.load %arg1[%c2, %c0_6, %c0_7] : memref<3x16x128xf32, #tpu.memory_space<vmem>>, vector<1x16x128xf32>
    %11 = vector.shape_cast %10 : vector<1x16x128xf32> to vector<16x128xf32>
    %12 = arith.mulf %9, %11 : vector<16x128xf32>
    %cst_8 = arith.constant dense<0.000000e+00> : vector<128xf32>
    %13 = vector.multi_reduction <add>, %12, %cst_8 [0] : vector<16x128xf32> to vector<128xf32>
    %14 = vector.shape_cast %13 : vector<128xf32> to vector<1x128xf32>
    %c0_9 = arith.constant 0 : index
    %c0_10 = arith.constant 0 : index
    %15 = vector.load %arg2[%c0_9, %c0_10] : memref<1x128xf32, #tpu.memory_space<vmem>>, vector<1x128xf32>
    tpu.vector_store %arg2[%c0_9, %c0_10], %14 {strides = array<i32>} : memref<1x128xf32, #tpu.memory_space<vmem>>, vector<1x128xf32>,
    return
  }
}

</mosaic_0001>

<llo_original>
// kernel: mlp_forward.1
$region0: #{mlp_forward.1}
  #allocation0 [shape = 'u32[]', space=smem, size = 0x4, offset = 0x4, fixed_abs, tag = 'smem constant byte address 0x4 - core index']
  #allocation1 [shape = 'u32[144,128]{1,0:T(1,128)}', space=vmem, size = 0x12000, scoped, tag = 'internal scratch']
  %s0 = inlined_call_operand.vmem [shape: f32[1,128], index: 0, kind: input, shape index: {}]
  %s1 = inlined_call_operand.vmem [shape: f32[3,16,128], index: 1, kind: input, shape index: {}]
  %s2 = inlined_call_operand.vmem [shape: f32[1,128], index: 2, kind: output, shape index: {}]
  %s3 = sld [smem:[#allocation0]]
  $region18: #{mlp_forward.1} parent=0
    _
  %s5 = ssub.s32 1, %s3
  %s6 = scalar_select 0, %s5, %s3
  // Predicated region
  $region2: #{mlp_forward.1} parent=0 // pred_check
    _
  $region3: #{mlp_forward.1} parent=0 // pred_check_branch
    %8 = sbr.rel (0) target = $region5
  $region4: #{mlp_forward.1} parent=0 // pred_region
    _
  $region5: #{mlp_forward.1} parent=0 // pred_fallthru
    _
  // Predicated region
  $region6: #{mlp_forward.1} parent=0 // pred_check
    _
  $region7: #{mlp_forward.1} parent=0 // pred_check_branch
    %10 = sbr.rel (0) target = $region9
  $region8: #{mlp_forward.1} parent=0 // pred_region
    _
  $region9: #{mlp_forward.1} parent=0 // pred_fallthru
    _
  %v11 = vld [vmem:[%s0] sm:$0x1]
  %v12 = vld [vmem:[%s1] sm:$0xff]
  %v13 = vld [vmem:[%s1 + $0x8] sm:$0xff]
  %v15 = vlaneseq
  %v16 = vshrl.u32 %v15, 7
  %v17 = vsub.s32 0, %v16
  %v18 = vrot.slane %v11, %v17
  %v20 = vmul.f32 %v12, %v18
  %v21 = vmul.f32 %v13, %v18
  %s22 = scalar_lea.vmem %s1, 16
  %v23 = vld [vmem:[%s22] sm:$0xff]
  %v24 = vld [vmem:[%s22 + $0x8] sm:$0xff]
  %v25 = vadd.f32 %v20, %v23
  %v26 = vadd.f32 %v21, %v24
  %v27 = vmax.f32 %v25, 0.0
  %v28 = vmax.f32 %v26, 0.0
  %s29 = scalar_lea.vmem %s1, 32
  %v30 = vld [vmem:[%s29] sm:$0xff]
  %v31 = vld [vmem:[%s29 + $0x8] sm:$0xff]
  %v32 = vmul.f32 %v27, %v30
  %v33 = vmul.f32 %v28, %v31
  %v34 = vadd.f32 %v32, %v33
  %v35 = vrot.slane %v34, 4
  %v36 = vadd.f32 %v34, %v35
  %v37 = vrot.slane %v36, 2
  %v38 = vadd.f32 %v36, %v37
  %v39 = vrot.slane %v38, 1
  %v40 = vadd.f32 %v38, %v39
  %41 = vst [vmem:[%s2] sm:$0x1] %v40
  // Predicated region
  $region10: #{mlp_forward.1} parent=0 // pred_check
    _
  $region11: #{mlp_forward.1} parent=0 // pred_check_branch
    %43 = sbr.rel (0) target = $region13
  $region12: #{mlp_forward.1} parent=0 // pred_region
    _
  $region13: #{mlp_forward.1} parent=0 // pred_fallthru
    _
  // Predicated region
  $region14: #{mlp_forward.1} parent=0 // pred_check
    _
  $region15: #{mlp_forward.1} parent=0 // pred_check_branch
    %45 = sbr.rel (0) target = $region17
  $region16: #{mlp_forward.1} parent=0 // pred_region
    _
  $region17: #{mlp_forward.1} parent=0 // pred_fallthru
    _

</llo_original>
